<compile_context>
chip_gen: v7x
topology: tpu7x:2x2x1
jax: 0.10.0
libtpu: 0.0.40
codegen_flags: <defaults>
</compile_context>

<pallas_src>
import functools

import jax
import jax.numpy as jnp
from jax.experimental import pallas as pl
from jax.experimental.pallas import tpu as pltpu


def highway_kernel(x_ref, w_ref, b_ref, o_ref):
    x = x_ref[...]                                            # (TM, L) lane-dense
    L = x.shape[-1]
    # Fused block-diagonal matmul: (TM, L) @ (L, 2L); cols [0,L)=proj, [L,2L)=gate.
    y = jnp.dot(x, w_ref[...], preferred_element_type=jnp.float32) + b_ref[...]
    proj = jnp.maximum(y[:, :L], 0.0)
    gate = jax.nn.sigmoid(y[:, L:])
    # highway = gate*proj + (1-gate)*x == x + gate*(proj - x)
    o_ref[...] = (x + gate * (proj - x)).astype(o_ref.dtype)


def pack_highway_params(wp_t, bp, wg_t, bg, fold):
    """One-time packing: block-diagonal fold of proj/gate weights + tiled bias.

    wp_t/wg_t: (E, E) = PyTorch nn.Linear weight transposed (in, out).
    Returns w_packed (fold*E, 2*fold*E), b_packed (1, 2*fold*E).
    """
    eye_f = jnp.eye(fold, dtype=wp_t.dtype)
    wp_bd = jnp.kron(eye_f, wp_t)                             # (L, L) block-diagonal
    wg_bd = jnp.kron(eye_f, wg_t)                             # (L, L) block-diagonal
    w_packed = jnp.concatenate([wp_bd, wg_bd], axis=1)        # (L, 2L)
    b_packed = jnp.concatenate(
        [jnp.tile(bp, fold), jnp.tile(bg, fold)]).reshape(1, -1)  # (1, 2L)
    return w_packed, b_packed


def highway_pallas(x, w_packed, b_packed, *, fold, tm=2048):
    """x: (..., E); w_packed/b_packed from pack_highway_params(fold)."""
    orig_shape = x.shape
    E = orig_shape[-1]
    L = fold * E
    x2d = x.reshape(-1, E)
    M = x2d.shape[0]

    # Pad row count to a multiple of the fold factor (folded garbage rows are
    # computed but sliced away before returning).
    Mp = pl.cdiv(M, fold) * fold
    pad = Mp - M
    if pad:
        x2d = jnp.concatenate([x2d, jnp.zeros((pad, E), x2d.dtype)], axis=0)
    Mf = Mp // fold
    xf = x2d.reshape(Mf, L)                                   # lane-dense rows

    # Row tile: large enough (~1 MiB) to amortize per-step overhead, clamped to
    # the full extent for small inputs (always a legal block shape).  Multi-step
    # grids shard across v7x's two TensorCores via the "parallel" semantic.
    TM = min(tm, Mf)
    grid = (pl.cdiv(Mf, TM),)

    out = pl.pallas_call(
        highway_kernel,
        out_shape=jax.ShapeDtypeStruct((Mf, L), x.dtype),
        grid=grid,
        in_specs=[
            pl.BlockSpec((TM, L), lambda i: (i, 0)),          # x row tile
            pl.BlockSpec((L, 2 * L), lambda i: (0, 0)),       # packed W (VMEM-resident)
            pl.BlockSpec((1, 2 * L), lambda i: (0, 0)),       # packed bias (VMEM-resident)
        ],
        out_specs=pl.BlockSpec((TM, L), lambda i: (i, 0)),
        compiler_params=pltpu.CompilerParams(
            dimension_semantics=("parallel",)),               # megacore-shardable rows
    )(xf, w_packed, b_packed)

    out2d = out.reshape(Mp, E)
    if pad:
        out2d = out2d[:M]
    return out2d.reshape(orig_shape)


def highway_ref(x, wp_t, bp, wg_t, bg):
    """Pure-JAX reference matching the PyTorch forward."""
    proj = jax.nn.relu(x @ wp_t + bp)
    gate = jax.nn.sigmoid(x @ wg_t + bg)
    return gate * proj + (1.0 - gate) * x


if __name__ == "__main__":
    word_embed_size = 32
    batch, seq = 2, 8

    key = jax.random.PRNGKey(0)
    kx, kwp, kbp, kwg, kbg = jax.random.split(key, 5)

    x = jax.random.normal(kx, (batch, seq, word_embed_size), dtype=jnp.float32)
    # Parameters (shapes from nn.Linear(E, E, bias=True)), stored pre-transposed
    # as (in, out) so the kernel computes y = x @ W^T + b exactly like nn.Linear.
    wp_t = jax.random.normal(kwp, (word_embed_size, word_embed_size), jnp.float32) * 0.1
    bp = jax.random.normal(kbp, (word_embed_size,), jnp.float32) * 0.1
    wg_t = jax.random.normal(kwg, (word_embed_size, word_embed_size), jnp.float32) * 0.1
    bg = jax.random.normal(kbg, (word_embed_size,), jnp.float32) * 0.1

    # Fold factor: pack rows until the lane axis is 128-wide (fold=4 at E=32).
    fold = 128 // word_embed_size if (word_embed_size <= 128 and
                                      128 % word_embed_size == 0) else 1

    # One-time parameter preparation (hoisted out of the per-call path).
    w_packed, b_packed = pack_highway_params(wp_t, bp, wg_t, bg, fold)

    highway_fn = jax.jit(functools.partial(highway_pallas, fold=fold))
    out = highway_fn(x, w_packed, b_packed)
    jax.block_until_ready(out)

    ref = highway_ref(x, wp_t, bp, wg_t, bg)
    assert out.shape == x.shape
    assert jnp.allclose(out, ref, atol=1e-5, rtol=1e-5), "mismatch vs reference"

    print("KERNEL_OK")
</pallas_src>

<mosaic_0001>
module attributes {stable_mosaic.version = 11 : i64} {
  func.func @highway_kernel(%arg0: i32, %arg1: memref<4x128xf32, #tpu.memory_space<vmem>>, %arg2: memref<128x256xf32, #tpu.memory_space<vmem>>, %arg3: memref<1x256xf32, #tpu.memory_space<vmem>>, %arg4: memref<4x128xf32, #tpu.memory_space<vmem>>) attributes {dimension_semantics = [#tpu.dimension_semantics<parallel>], iteration_bounds = array<i64: 1>, scalar_prefetch = 0 : i64, scratch_operands = 0 : i64, tpu.core_type = #tpu.core_type<tc>, window_params = [{transform_indices = @transform_0, window_bounds = array<i64: 4, 128>}, {pipeline_mode = #tpu.pipeline_mode<synchronous>, transform_indices = @transform_1, window_bounds = array<i64: 128, 256>}, {pipeline_mode = #tpu.pipeline_mode<synchronous>, transform_indices = @transform_2, window_bounds = array<i64: 1, 256>}, {transform_indices = @transform_3, window_bounds = array<i64: 4, 128>}]} {
    %c0 = arith.constant 0 : index
    %c0_0 = arith.constant 0 : index
    %0 = vector.load %arg1[%c0, %c0_0] : memref<4x128xf32, #tpu.memory_space<vmem>>, vector<4x128xf32>
    %c0_1 = arith.constant 0 : index
    %c0_2 = arith.constant 0 : index
    %1 = vector.load %arg2[%c0_1, %c0_2] : memref<128x256xf32, #tpu.memory_space<vmem>>, vector<128x256xf32>
    %cst = arith.constant dense<0.000000e+00> : vector<4x256xf32>
    %2 = tpu.matmul %0, %1, %cst {dimension_numbers = #tpu.dot_dimension_numbers<[1], [0], [0], [1], [0, 0, 1, 1], [], []>} : vector<4x128xf32>, vector<128x256xf32>, vector<4x256xf32> -> vector<4x256xf32>
    %c0_3 = arith.constant 0 : index
    %c0_4 = arith.constant 0 : index
    %3 = vector.load %arg3[%c0_3, %c0_4] : memref<1x256xf32, #tpu.memory_space<vmem>>, vector<1x256xf32>
    %4 = vector.broadcast %3 : vector<1x256xf32> to vector<4x256xf32>
    %5 = arith.addf %2, %4 : vector<4x256xf32>
    %6 = vector.extract_strided_slice %5 {offsets = [0, 0], sizes = [4, 128], strides = [1, 1]} : vector<4x256xf32> to vector<4x128xf32>
    %cst_5 = arith.constant 0.000000e+00 : f32
    %7 = vector.broadcast %cst_5 : f32 to vector<4x128xf32>
    %8 = arith.maximumf %6, %7 : vector<4x128xf32>
    %9 = vector.extract_strided_slice %5 {offsets = [0, 128], sizes = [4, 128], strides = [1, 1]} : vector<4x256xf32> to vector<4x128xf32>
    %10 = arith.negf %9 : vector<4x128xf32>
    %11 = math.exp %10 : vector<4x128xf32>
    %cst_6 = arith.constant 1.000000e+00 : f32
    %12 = vector.broadcast %cst_6 : f32 to vector<4x128xf32>
    %13 = arith.addf %12, %11 : vector<4x128xf32>
    %14 = arith.divf %12, %13 : vector<4x128xf32>
    %15 = arith.subf %8, %0 : vector<4x128xf32>
    %16 = arith.mulf %14, %15 : vector<4x128xf32>
    %17 = arith.addf %0, %16 : vector<4x128xf32>
    %c0_7 = arith.constant 0 : index
    %c0_8 = arith.constant 0 : index
    %18 = vector.load %arg4[%c0_7, %c0_8] : memref<4x128xf32, #tpu.memory_space<vmem>>, vector<4x128xf32>
    tpu.vector_store %arg4[%c0_7, %c0_8], %17 {strides = array<i32>} : memref<4x128xf32, #tpu.memory_space<vmem>>, vector<4x128xf32>,
    return
  }
  func.func @transform_0(%arg0: i32) -> (i32, i32) {
    %c0_i32 = arith.constant 0 : i32
    %c0_i32_0 = arith.constant 0 : i32
    return %arg0, %c0_i32 : i32, i32
  }
  func.func @transform_1(%arg0: i32) -> (i32, i32) {
    %c0_i32 = arith.constant 0 : i32
    %c0_i32_0 = arith.constant 0 : i32
    %c0_i32_1 = arith.constant 0 : i32
    return %c0_i32, %c0_i32_0 : i32, i32
  }
  func.func @transform_2(%arg0: i32) -> (i32, i32) {
    %c0_i32 = arith.constant 0 : i32
    %c0_i32_0 = arith.constant 0 : i32
    %c0_i32_1 = arith.constant 0 : i32
    return %c0_i32, %c0_i32_0 : i32, i32
  }
  func.func @transform_3(%arg0: i32) -> (i32, i32) {
    %c0_i32 = arith.constant 0 : i32
    %c0_i32_0 = arith.constant 0 : i32
    return %arg0, %c0_i32 : i32, i32
  }
}

</mosaic_0001>

<llo_original>
// kernel: highway_pallas.1
$region0: #{highway_pallas.1}
  #allocation0 [shape = 'u32[]', space=smem, size = 0x4, offset = 0x4, fixed_abs, tag = 'smem constant byte address 0x4 - core index']
  #allocation1 [shape = 'u32[144,128]{1,0:T(1,128)}', space=vmem, size = 0x12000, scoped, tag = 'internal scratch']
  %s0 = inlined_call_operand.vmem [shape: f32[4,128], index: 0, kind: input, shape index: {}]
  %s1 = inlined_call_operand.hbm [shape: f32[128,256], index: 1, kind: input, shape index: {}]
  %s2 = inlined_call_operand.vmem [shape: f32[1,256], index: 2, kind: input, shape index: {}]
  %s3 = inlined_call_operand.vmem [shape: f32[4,128], index: 3, kind: output, shape index: {}]
  %s4 = sld [smem:[#allocation0]]
  $region26: #{highway_pallas.1} parent=0
    _
  %s6 = ssub.s32 1, %s4
  %s7 = scalar_select 0, %s6, %s4
  $region1: #{highway_pallas.1} parent=0
    #allocation2 [shape = 'u8[131072]{0}', space=vmem, size = 0x20000, scoped, tag = 'input window, operand 1, single buffered']
    #allocation3 [shape = 's32[1]{0}', space=sflag, size = 0x4, scoped, tag = 'scoped memory for highway_pallas.1']
    %8 = vsyncpa [#allocation3], 0
    // Predicated region
    $region2: #{highway_pallas.1} parent=1 // pred_check
      _
    $region3: #{highway_pallas.1} parent=1 // pred_check_branch
      %10 = sbr.rel (0) target = $region5
    $region4: #{highway_pallas.1} parent=1 // pred_region
      _
    $region5: #{highway_pallas.1} parent=1 // pred_fallthru
      _
    // Predicated region
    $region6: #{highway_pallas.1} parent=1 // pred_check
      _
    $region7: #{highway_pallas.1} parent=1 // pred_check_branch
      %12 = sbr.rel (0) target = $region9
    $region8: #{highway_pallas.1} parent=1 // pred_region
      %s14 = ssub.s32 4096, 4096
      %15 = vsyncadd [#allocation3], %s14
      %s16 = sshll.u32 [#allocation2], 4
      %s17 = int_to_ptr.vmem [resolvable:$true] %s16
      %22 = dma.hbm_to_vmem [thread:$0]  %s1, 4096, %s17, [#allocation3], 256, 256, 16
    $region9: #{highway_pallas.1} parent=1 // pred_fallthru
      _
    // Predicated region
    $region10: #{highway_pallas.1} parent=1 // pred_check
      _
    $region11: #{highway_pallas.1} parent=1 // pred_check_branch
      %24 = sbr.rel (0) target = $region13
    $region12: #{highway_pallas.1} parent=1 // pred_region
      _
    $region13: #{highway_pallas.1} parent=1 // pred_fallthru
      _
    // Predicated region
    $region14: #{highway_pallas.1} parent=1 // pred_check
      _
    $region15: #{highway_pallas.1} parent=1 // pred_check_branch
      %26 = sbr.rel (0) target = $region17
    $region16: #{highway_pallas.1} parent=1 // pred_region
      %27 = dma.done [#allocation3], 4096
    $region17: #{highway_pallas.1} parent=1 // pred_fallthru
      _
    %v28 = vld [vmem:[%s0] sm:$0xf]
    %v29 = vld [vmem:[#allocation2] sm:$0xff]
    %v30 = vld [vmem:[#allocation2 + $0x8] sm:$0xff]
    %v31 = vld [vmem:[#allocation2 + $0x10] sm:$0xff]
    %v32 = vld [vmem:[#allocation2 + $0x18] sm:$0xff]
    %v33 = vld [vmem:[#allocation2 + $0x20] sm:$0xff]
    %v34 = vld [vmem:[#allocation2 + $0x28] sm:$0xff]
    %v35 = vld [vmem:[#allocation2 + $0x30] sm:$0xff]
    %v36 = vld [vmem:[#allocation2 + $0x38] sm:$0xff]
    %v37 = vld [vmem:[#allocation2 + $0x40] sm:$0xff]
    %v38 = vld [vmem:[#allocation2 + $0x48] sm:$0xff]
    %v39 = vld [vmem:[#allocation2 + $0x50] sm:$0xff]
    %v40 = vld [vmem:[#allocation2 + $0x58] sm:$0xff]
    %v41 = vld [vmem:[#allocation2 + $0x60] sm:$0xff]
    %v42 = vld [vmem:[#allocation2 + $0x68] sm:$0xff]
    %v43 = vld [vmem:[#allocation2 + $0x70] sm:$0xff]
    %v44 = vld [vmem:[#allocation2 + $0x78] sm:$0xff]
    %v45 = vld [vmem:[#allocation2 + $0x80] sm:$0xff]
    %v46 = vld [vmem:[#allocation2 + $0x88] sm:$0xff]
    %v47 = vld [vmem:[#allocation2 + $0x90] sm:$0xff]
    %v48 = vld [vmem:[#allocation2 + $0x98] sm:$0xff]
    %v49 = vld [vmem:[#allocation2 + $0xa0] sm:$0xff]
    %v50 = vld [vmem:[#allocation2 + $0xa8] sm:$0xff]
    %v51 = vld [vmem:[#allocation2 + $0xb0] sm:$0xff]
    %v52 = vld [vmem:[#allocation2 + $0xb8] sm:$0xff]
    %v53 = vld [vmem:[#allocation2 + $0xc0] sm:$0xff]
    %v54 = vld [vmem:[#allocation2 + $0xc8] sm:$0xff]
    %v55 = vld [vmem:[#allocation2 + $0xd0] sm:$0xff]
    %v56 = vld [vmem:[#allocation2 + $0xd8] sm:$0xff]
    %v57 = vld [vmem:[#allocation2 + $0xe0] sm:$0xff]
    %v58 = vld [vmem:[#allocation2 + $0xe8] sm:$0xff]
    %v59 = vld [vmem:[#allocation2 + $0xf0] sm:$0xff]
    %v60 = vld [vmem:[#allocation2 + $0xf8] sm:$0xff]
    %v61 = vld [vmem:[%s2] sm:$0x3]
    %v63 = vlaneseq
    %v64 = vshrl.u32 %v63, 7
    %v65 = vsub.s32 0, %v64
    %v66 = vrot.slane %v61, %v65
    %v67 = vlaneseq
    %v68 = vshrl.u32 %v67, 7
    %v69 = vsub.s32 1, %v68
    %v70 = vrot.slane %v61, %v69
    %73 = vmatprep.subr.mxu0 %v30
    %74 = vmatpush1.msra.mxu0 %v29
    %75 = vmatprep.subr.mxu0 %v32
    %76 = vmatpush1.msra.mxu0 %v31
    %77 = vmatprep.subr.mxu0 %v34
    %78 = vmatpush1.msra.mxu0 %v33
    %79 = vmatprep.subr.mxu0 %v36
    %80 = vmatpush1.msra.mxu0 %v35
    %81 = vmatprep.subr.mxu0 %v38
    %82 = vmatpush1.msra.mxu0 %v37
    %83 = vmatprep.subr.mxu0 %v40
    %84 = vmatpush1.msra.mxu0 %v39
    %85 = vmatprep.subr.mxu0 %v42
    %86 = vmatpush1.msra.mxu0 %v41
    %87 = vmatprep.subr.mxu0 %v44
    %88 = vmatpush1.msra.mxu0 %v43
    %89 = vmatprep.subr.mxu0 %v46
    %90 = vmatpush1.msra.mxu0 %v45
    %91 = vmatprep.subr.mxu0 %v48
    %92 = vmatpush1.msra.mxu0 %v47
    %93 = vmatprep.subr.mxu0 %v50
    %94 = vmatpush1.msra.mxu0 %v49
    %95 = vmatprep.subr.mxu0 %v52
    %96 = vmatpush1.msra.mxu0 %v51
    %97 = vmatprep.subr.mxu0 %v54
    %98 = vmatpush1.msra.mxu0 %v53
    %99 = vmatprep.subr.mxu0 %v56
    %100 = vmatpush1.msra.mxu0 %v55
    %101 = vmatprep.subr.mxu0 %v58
    %102 = vmatpush1.msra.mxu0 %v57
    %103 = vmatprep.subr.mxu0 %v60
    %104 = vmatpush1.msra.mxu0 %v59
    %105 = vmatprep.subr.mxu0 0.0
    %106 = vmatpush1.msra.mxu0 0.0
    %107 = vmatprep.subr.mxu0 0.0
    %108 = vmatpush1.msra.mxu0 0.0
    %109 = vmatprep.subr.mxu0 0.0
    %110 = vmatpush1.msra.mxu0 0.0
    %111 = vmatprep.subr.mxu0 0.0
    %112 = vmatpush1.msra.mxu0 0.0
    %113 = vmatprep.subr.mxu0 0.0
    %114 = vmatpush1.msra.mxu0 0.0
    %115 = vmatprep.subr.mxu0 0.0
    %116 = vmatpush1.msra.mxu0 0.0
    %117 = vmatprep.subr.mxu0 0.0
    %118 = vmatpush1.msra.mxu0 0.0
    %119 = vmatprep.subr.mxu0 0.0
    %120 = vmatpush1.msra.mxu0 0.0
    %121 = vmatprep.subr.mxu0 0.0
    %122 = vmatpush1.msra.mxu0 0.0
    %123 = vmatprep.subr.mxu0 0.0
    %124 = vmatpush1.msra.mxu0 0.0
    %125 = vmatprep.subr.mxu0 0.0
    %126 = vmatpush1.msra.mxu0 0.0
    %127 = vmatprep.subr.mxu0 0.0
    %128 = vmatpush1.msra.mxu0 0.0
    %129 = vmatprep.subr.mxu0 0.0
    %130 = vmatpush1.msra.mxu0 0.0
    %131 = vmatprep.subr.mxu0 0.0
    %132 = vmatpush1.msra.mxu0 0.0
    %133 = vmatprep.subr.mxu0 0.0
    %134 = vmatpush1.msra.mxu0 0.0
    %135 = vmatprep.subr.mxu0 0.0
    %136 = vmatpush1.msra.mxu0 0.0
    %137 = vmatprep.mubr.f32.mxu0 0.0
    %138 = vmatmul.mubr.f32.gmra.mrb[0].mxu0 %v28
    %v139 = vpop.f32.mrb[0].mxu0
    %v140 = vadd.f32 %v66, %v139
    %v141 = vpop.f32.mrb[0].mxu0
    %v142 = vadd.f32 %v70, %v141
    %143 = vdwg.mxu0
    %v144 = vmax.f32 %v140, 0.0
    %v145 = vxor.u32 %v142, 2147483648
    %v146 = vmul.f32 %v145, 1.442695
    %v147 = vpow.pop %v146
    %v148 = vadd.f32 %v147, 1.0
    %v149 = vrcp.pop %v148
    %v150 = vmul.f32 1.0, %v149
    %v151 = vsub.f32 %v144, %v28
    %v152 = vmul.f32 %v150, %v151
    %v153 = vadd.f32 %v28, %v152
    %154 = vst [vmem:[%s3] sm:$0xf] %v153
    // Predicated region
    $region18: #{highway_pallas.1} parent=1 // pred_check
      _
    $region19: #{highway_pallas.1} parent=1 // pred_check_branch
      %156 = sbr.rel (0) target = $region21
    $region20: #{highway_pallas.1} parent=1 // pred_region
      _
    $region21: #{highway_pallas.1} parent=1 // pred_fallthru
      _
    // Predicated region
    $region22: #{highway_pallas.1} parent=1 // pred_check
      _
    $region23: #{highway_pallas.1} parent=1 // pred_check_branch
      %158 = sbr.rel (0) target = $region25
    $region24: #{highway_pallas.1} parent=1 // pred_region
      _
    $region25: #{highway_pallas.1} parent=1 // pred_fallthru
      _
    %159 = vsyncpa [#allocation3], 1

</llo_original>
